<compile_context>
chip_gen: v7x
topology: tpu7x:2x2x1
jax: 0.10.0
libtpu: 0.0.40
codegen_flags: <defaults>
</compile_context>

<pallas_src>
import functools

import numpy as np
import jax
import jax.numpy as jnp
from jax import lax
from jax.experimental import pallas as pl
from jax.experimental.pallas import tpu as pltpu


def _get_act(activation):
    if activation == 'tanh':
        return jnp.tanh
    if activation == 'sigmoid':
        return jax.nn.sigmoid
    if activation == 'relu':
        return lambda x: jnp.maximum(x, 0.0)
    # TODO(synk): 'prelu' needs an extra learnable scalar input; not wired.
    raise ValueError('Unsupported activation: %s' % activation)


def _tree_kernel(leaf_tok_ref, lch_ref, rch_ref,            # SMEM scalar prefetch
                 emb_ref, w_ref, b_ref,                      # VMEM inputs
                 out_ref,                                     # VMEM output (B, H)
                 states_ref, lbuf_ref, rbuf_ref,             # VMEM scratch
                 *, num_leaves, num_levels, max_w, batch, hidden,
                 root_slot, activation):
    act = _get_act(activation)
    leaf_rows = num_leaves * batch

    # ---- Leaf phase: per-row embedding gather driven by SMEM token ids ------
    # (replaces the vocab-scaled one-hot @ emb matmul), then ONE bulk
    # activation over the whole leaf slab.
    def leaf_body(j, carry):
        tok = leaf_tok_ref[j]
        states_ref[pl.ds(j, 1), :] = emb_ref[pl.ds(tok, 1), :]
        return carry

    lax.fori_loop(0, leaf_rows, leaf_body, 0, unroll=min(leaf_rows, 8))
    states_ref[0:leaf_rows, :] = act(states_ref[0:leaf_rows, :])

    # ---- Internal nodes: one matmul pair per LEVEL (level-batched) ----------
    # Children are gathered into (max_w*B, H) slabs; the concat matmul is split
    # as lh @ W_L + rh @ W_R, so there is no (B, 2H) staging round trip.
    w_l = w_ref[0:hidden, :]                                  # (H, H), hoisted
    w_r = w_ref[hidden:2 * hidden, :]                         # (H, H), hoisted
    bias = jnp.broadcast_to(b_ref[...], (max_w * batch, hidden))  # hoisted

    def level_body(l, carry):
        base = l * max_w

        def gather_one(k, c):
            li = lch_ref[base + k]
            ri = rch_ref[base + k]
            lbuf_ref[pl.ds(k * batch, batch), :] = \
                states_ref[pl.ds(li * batch, batch), :]
            rbuf_ref[pl.ds(k * batch, batch), :] = \
                states_ref[pl.ds(ri * batch, batch), :]
            return c

        lax.fori_loop(0, max_w, gather_one, 0, unroll=min(max_w, 8))

        # TODO(synk): cast lbuf/rbuf/w halves to bf16 on v6e/v7x for MXU rate;
        # kept f32 here so the result matches the f32 reference tightly.
        h = act(jnp.dot(lbuf_ref[...], w_l, preferred_element_type=jnp.float32)
                + jnp.dot(rbuf_ref[...], w_r, preferred_element_type=jnp.float32)
                + bias)
        out_row = (num_leaves + l * max_w) * batch
        states_ref[pl.ds(out_row, max_w * batch), :] = h      # bulk level store
        return carry

    lax.fori_loop(0, num_levels, level_body, 0)

    r0 = root_slot * batch
    out_ref[...] = states_ref[r0:r0 + batch, :].astype(out_ref.dtype)


def _round_up(x, m):
    return (x + m - 1) // m * m


def _vmem_padded_bytes(shape, itemsize=4):
    """VMEM footprint of an f32/i32 array with (8,128)-tiled trailing dims."""
    shape = tuple(int(d) for d in shape)
    if len(shape) == 1:
        shape = (1,) + shape
    lead = 1
    for d in shape[:-2]:
        lead *= d
    return lead * _round_up(shape[-2], 8) * _round_up(shape[-1], 128) * itemsize


def _vmem_cap_bytes():
    """Physical VMEM per TensorCore (64 MiB v7x, 128 MiB v5e/v6e)."""
    try:
        cap = int(pltpu.get_tpu_info().vmem_capacity_bytes)
        if cap > 0:
            return cap
    except Exception:
        pass
    return 64 * 1024 * 1024          # conservative fallback (v7x)


def _levelize(left, right, num_leaves):
    """Group internal nodes by depth; remap buffer ids to
    slot = num_leaves + level*max_w + position (levels padded to max_w).

    left/right must be host-concrete (the tree structure is a static Python
    object in the original module, so it is known at trace time)."""
    left = np.asarray(left)
    right = np.asarray(right)
    num_internal = int(left.shape[0])
    if num_internal == 0:
        lch = np.zeros((1,), np.int32)
        rch = np.zeros((1,), np.int32)
        return lch, rch, 0, 1, num_leaves - 1, num_leaves

    n_nodes = num_leaves + num_internal
    depth = np.zeros(n_nodes, np.int64)
    for i in range(num_internal):
        li, ri = int(left[i]), int(right[i])
        hi = num_leaves + i
        if not (0 <= li < hi and 0 <= ri < hi):
            raise ValueError('node %d: children (%d, %d) are not computed '
                             'before it' % (i, li, ri))
        depth[hi] = 1 + max(depth[li], depth[ri])

    num_levels = int(depth[num_leaves:].max())
    levels = [[] for _ in range(num_levels)]
    for i in range(num_internal):
        levels[int(depth[num_leaves + i]) - 1].append(i)
    max_w = max(len(lv) for lv in levels)
    # TODO(synk): padding every level to max_w wastes MXU rows on very skewed
    # trees; bucket levels by width if that ever matters.
    num_slots = num_leaves + num_levels * max_w

    new_slot = np.arange(n_nodes, dtype=np.int64)
    for d, lv in enumerate(levels):
        for p, i in enumerate(lv):
            new_slot[num_leaves + i] = num_leaves + d * max_w + p

    lch = np.zeros((num_levels * max_w,), np.int32)   # padded entries -> leaf 0
    rch = np.zeros((num_levels * max_w,), np.int32)
    for d, lv in enumerate(levels):
        for p, i in enumerate(lv):
            lch[d * max_w + p] = new_slot[int(left[i])]
            rch[d * max_w + p] = new_slot[int(right[i])]

    root_slot = int(new_slot[n_nodes - 1])   # root = last buffer id (convention)
    return lch, rch, num_levels, max_w, root_slot, num_slots


def tree_network_forward(leaf_tokens, left, right, emb, w_t, b,
                         activation='tanh'):
    """leaf_tokens: (num_leaves, B) int32; left/right: (num_internal,) host
    ints in bottom-up topological order (root = last buffer id); emb: (V, H);
    w_t: (2H, H) (Linear weight pre-transposed); b: (1, H).
    Returns the root hidden state, shape (B, H)."""
    num_leaves, batch = leaf_tokens.shape
    _, hidden = emb.shape
    lch, rch, num_levels, max_w, root_slot, num_slots = _levelize(
        left, right, num_leaves)

    kernel = functools.partial(
        _tree_kernel, num_leaves=num_leaves, num_levels=num_levels,
        max_w=max_w, batch=batch, hidden=hidden, root_slot=root_slot,
        activation=activation)

    leaf_flat = jnp.asarray(leaf_tokens, jnp.int32).reshape(num_leaves * batch)

    grid_spec = pltpu.PrefetchScalarGridSpec(
        num_scalar_prefetch=3,            # leaf tokens, left ids, right ids -> SMEM
        grid=(1,),                        # whole tree handled in-kernel
        in_specs=[
            pl.BlockSpec(emb.shape, lambda i, *_: (0, 0)),
            pl.BlockSpec(w_t.shape, lambda i, *_: (0, 0)),
            pl.BlockSpec(b.shape, lambda i, *_: (0, 0)),
        ],
        out_specs=pl.BlockSpec((batch, hidden), lambda i, *_: (0, 0)),
        scratch_shapes=[
            # Node states packed densely along sublanes: (num_slots*B, H).
            # TODO(synk): for very deep trees keep only the live frontier in
            # VMEM and spill finished levels to HBM via make_async_copy.
            pltpu.VMEM((num_slots * batch, hidden), jnp.float32),
            pltpu.VMEM((max_w * batch, hidden), jnp.float32),   # left children
            pltpu.VMEM((max_w * batch, hidden), jnp.float32),   # right children
        ],
    )

    # VMEM budget: scratch + (double-buffered) full-array inputs/output + slack,
    # capped by the physical per-core VMEM reported by the hardware.
    # TODO(synk): single-buffer emb/w/b (pipeline_mode=pl.Buffered(1)) once a
    # real vocabulary makes the double-buffered table the dominant term.
    budget = (_vmem_padded_bytes((num_slots * batch, hidden))
              + 2 * _vmem_padded_bytes((max_w * batch, hidden))
              + 2 * (_vmem_padded_bytes(emb.shape)
                     + _vmem_padded_bytes(w_t.shape)
                     + _vmem_padded_bytes(b.shape)
                     + _vmem_padded_bytes((batch, hidden)))
              + (4 << 20))
    vmem_bytes = int(min(max(budget, 16 << 20), _vmem_cap_bytes() - (8 << 20)))

    # TODO(synk): on v7x, shard independent trees (or the root's two subtrees)
    # across the two TensorCores with a leading 'parallel' grid axis.
    return pl.pallas_call(
        kernel,
        out_shape=jax.ShapeDtypeStruct((batch, hidden), jnp.float32),
        grid_spec=grid_spec,
        compiler_params=pltpu.CompilerParams(
            dimension_semantics=("arbitrary",),
            vmem_limit_bytes=vmem_bytes),
    )(leaf_flat,
      jnp.asarray(lch, jnp.int32), jnp.asarray(rch, jnp.int32),
      emb, w_t, b)


def reference_forward(leaf_tokens, left, right, emb, w_t, b, activation='tanh'):
    """Pure-JAX reference mirroring TreeNetwork.recursive_forward."""
    act = {'tanh': jnp.tanh, 'sigmoid': jax.nn.sigmoid,
           'relu': lambda x: jnp.maximum(x, 0.0)}[activation]
    num_leaves, _ = leaf_tokens.shape
    states = [act(emb[leaf_tokens[n]]) for n in range(num_leaves)]
    for i in range(np.asarray(left).shape[0]):
        h_agr = jnp.concatenate(
            [states[int(left[i])], states[int(right[i])]], axis=1)
        states.append(act(h_agr @ w_t + b))
    return states[-1]


if __name__ == "__main__":
    input_size, hidden_size, batch = 16, 32, 2

    key = jax.random.PRNGKey(0)
    k1, k2, k3, k4 = jax.random.split(key, 4)

    # Deterministic synthetic parameters (shapes from TreeNetwork.__init__).
    emb = jax.random.normal(k1, (input_size, hidden_size), jnp.float32)
    # nn.Linear(2H, H): weight (H, 2H), bias (H,).  Pass the weight transposed.
    w = jax.random.normal(k2, (hidden_size, 2 * hidden_size), jnp.float32)
    w = w * (1.0 / jnp.sqrt(2.0 * hidden_size))
    w_t = jnp.transpose(w)                                     # (2H, H)
    b = (0.1 * jax.random.normal(k3, (hidden_size,), jnp.float32)
         ).reshape(1, hidden_size)

    # Tree:  root = (N0, N1); N0 = (P0, P1); N1 = (P2, P3)
    # Buffer ids: P0..P3 -> 0..3, N0 -> 4, N1 -> 5, root -> 6.
    leaf_tokens = jax.random.randint(k4, (4, batch), 0, input_size, jnp.int32)
    left = np.array([0, 2, 4], np.int32)
    right = np.array([1, 3, 5], np.int32)

    out = tree_network_forward(leaf_tokens, left, right, emb, w_t, b)
    out = jax.block_until_ready(out)

    ref = reference_forward(leaf_tokens, left, right, emb, w_t, b)
    assert out.shape == (batch, hidden_size)
    assert jnp.allclose(out, ref, atol=1e-5, rtol=1e-5), "mismatch vs reference"
    print("KERNEL_OK")
</pallas_src>

<mosaic_0001>
module attributes {stable_mosaic.version = 11 : i64} {
  func.func @_tree_kernel(%arg0: i32, %arg1: memref<8xi32, #tpu.memory_space<smem>>, %arg2: memref<4xi32, #tpu.memory_space<smem>>, %arg3: memref<4xi32, #tpu.memory_space<smem>>, %arg4: memref<16x32xf32, #tpu.memory_space<vmem>>, %arg5: memref<64x32xf32, #tpu.memory_space<vmem>>, %arg6: memref<1x32xf32, #tpu.memory_space<vmem>>, %arg7: memref<2x32xf32, #tpu.memory_space<vmem>>, %arg8: memref<16x32xf32, #tpu.memory_space<vmem>>, %arg9: memref<4x32xf32, #tpu.memory_space<vmem>>, %arg10: memref<4x32xf32, #tpu.memory_space<vmem>>) attributes {dimension_semantics = [#tpu.dimension_semantics<arbitrary>], iteration_bounds = array<i64: 1>, scalar_prefetch = 3 : i64, scratch_operands = 3 : i64, tpu.core_type = #tpu.core_type<tc>, window_params = [{pipeline_mode = #tpu.pipeline_mode<synchronous>, transform_indices = @transform_0, window_bounds = array<i64: 16, 32>}, {pipeline_mode = #tpu.pipeline_mode<synchronous>, transform_indices = @transform_1, window_bounds = array<i64: 64, 32>}, {pipeline_mode = #tpu.pipeline_mode<synchronous>, transform_indices = @transform_2, window_bounds = array<i64: 1, 32>}, {pipeline_mode = #tpu.pipeline_mode<synchronous>, transform_indices = @transform_3, window_bounds = array<i64: 2, 32>}]} {
    %c0_i32 = arith.constant 0 : i32
    %0 = arith.index_cast %c0_i32 : i32 to index
    %1 = memref.load %arg1[%0] : memref<8xi32, #tpu.memory_space<smem>>
    %2 = arith.index_cast %1 : i32 to index
    %c0 = arith.constant 0 : index
    %3 = vector.load %arg4[%2, %c0] : memref<16x32xf32, #tpu.memory_space<vmem>>, vector<1x32xf32>
    %4 = arith.index_cast %c0_i32 : i32 to index
    %c0_0 = arith.constant 0 : index
    %5 = vector.load %arg8[%4, %c0_0] : memref<16x32xf32, #tpu.memory_space<vmem>>, vector<1x32xf32>
    tpu.vector_store %arg8[%4, %c0_0], %3 {strides = array<i32>} : memref<16x32xf32, #tpu.memory_space<vmem>>, vector<1x32xf32>,
    %c1_i32 = arith.constant 1 : i32
    %6 = arith.index_cast %c1_i32 : i32 to index
    %7 = memref.load %arg1[%6] : memref<8xi32, #tpu.memory_space<smem>>
    %8 = arith.index_cast %7 : i32 to index
    %c0_1 = arith.constant 0 : index
    %9 = vector.load %arg4[%8, %c0_1] : memref<16x32xf32, #tpu.memory_space<vmem>>, vector<1x32xf32>
    %10 = arith.index_cast %c1_i32 : i32 to index
    %c0_2 = arith.constant 0 : index
    %11 = vector.load %arg8[%10, %c0_2] : memref<16x32xf32, #tpu.memory_space<vmem>>, vector<1x32xf32>
    tpu.vector_store %arg8[%10, %c0_2], %9 {strides = array<i32>} : memref<16x32xf32, #tpu.memory_space<vmem>>, vector<1x32xf32>,
    %c2_i32 = arith.constant 2 : i32
    %12 = arith.index_cast %c2_i32 : i32 to index
    %13 = memref.load %arg1[%12] : memref<8xi32, #tpu.memory_space<smem>>
    %14 = arith.index_cast %13 : i32 to index
    %c0_3 = arith.constant 0 : index
    %15 = vector.load %arg4[%14, %c0_3] : memref<16x32xf32, #tpu.memory_space<vmem>>, vector<1x32xf32>
    %16 = arith.index_cast %c2_i32 : i32 to index
    %c0_4 = arith.constant 0 : index
    %17 = vector.load %arg8[%16, %c0_4] : memref<16x32xf32, #tpu.memory_space<vmem>>, vector<1x32xf32>
    tpu.vector_store %arg8[%16, %c0_4], %15 {strides = array<i32>} : memref<16x32xf32, #tpu.memory_space<vmem>>, vector<1x32xf32>,
    %c3_i32 = arith.constant 3 : i32
    %18 = arith.index_cast %c3_i32 : i32 to index
    %19 = memref.load %arg1[%18] : memref<8xi32, #tpu.memory_space<smem>>
    %20 = arith.index_cast %19 : i32 to index
    %c0_5 = arith.constant 0 : index
    %21 = vector.load %arg4[%20, %c0_5] : memref<16x32xf32, #tpu.memory_space<vmem>>, vector<1x32xf32>
    %22 = arith.index_cast %c3_i32 : i32 to index
    %c0_6 = arith.constant 0 : index
    %23 = vector.load %arg8[%22, %c0_6] : memref<16x32xf32, #tpu.memory_space<vmem>>, vector<1x32xf32>
    tpu.vector_store %arg8[%22, %c0_6], %21 {strides = array<i32>} : memref<16x32xf32, #tpu.memory_space<vmem>>, vector<1x32xf32>,
    %c4_i32 = arith.constant 4 : i32
    %24 = arith.index_cast %c4_i32 : i32 to index
    %25 = memref.load %arg1[%24] : memref<8xi32, #tpu.memory_space<smem>>
    %26 = arith.index_cast %25 : i32 to index
    %c0_7 = arith.constant 0 : index
    %27 = vector.load %arg4[%26, %c0_7] : memref<16x32xf32, #tpu.memory_space<vmem>>, vector<1x32xf32>
    %28 = arith.index_cast %c4_i32 : i32 to index
    %c0_8 = arith.constant 0 : index
    %29 = vector.load %arg8[%28, %c0_8] : memref<16x32xf32, #tpu.memory_space<vmem>>, vector<1x32xf32>
    tpu.vector_store %arg8[%28, %c0_8], %27 {strides = array<i32>} : memref<16x32xf32, #tpu.memory_space<vmem>>, vector<1x32xf32>,
    %c5_i32 = arith.constant 5 : i32
    %30 = arith.index_cast %c5_i32 : i32 to index
    %31 = memref.load %arg1[%30] : memref<8xi32, #tpu.memory_space<smem>>
    %32 = arith.index_cast %31 : i32 to index
    %c0_9 = arith.constant 0 : index
    %33 = vector.load %arg4[%32, %c0_9] : memref<16x32xf32, #tpu.memory_space<vmem>>, vector<1x32xf32>
    %34 = arith.index_cast %c5_i32 : i32 to index
    %c0_10 = arith.constant 0 : index
    %35 = vector.load %arg8[%34, %c0_10] : memref<16x32xf32, #tpu.memory_space<vmem>>, vector<1x32xf32>
    tpu.vector_store %arg8[%34, %c0_10], %33 {strides = array<i32>} : memref<16x32xf32, #tpu.memory_space<vmem>>, vector<1x32xf32>,
    %c6_i32 = arith.constant 6 : i32
    %36 = arith.index_cast %c6_i32 : i32 to index
    %37 = memref.load %arg1[%36] : memref<8xi32, #tpu.memory_space<smem>>
    %38 = arith.index_cast %37 : i32 to index
    %c0_11 = arith.constant 0 : index
    %39 = vector.load %arg4[%38, %c0_11] : memref<16x32xf32, #tpu.memory_space<vmem>>, vector<1x32xf32>
    %40 = arith.index_cast %c6_i32 : i32 to index
    %c0_12 = arith.constant 0 : index
    %41 = vector.load %arg8[%40, %c0_12] : memref<16x32xf32, #tpu.memory_space<vmem>>, vector<1x32xf32>
    tpu.vector_store %arg8[%40, %c0_12], %39 {strides = array<i32>} : memref<16x32xf32, #tpu.memory_space<vmem>>, vector<1x32xf32>,
    %c7_i32 = arith.constant 7 : i32
    %42 = arith.index_cast %c7_i32 : i32 to index
    %43 = memref.load %arg1[%42] : memref<8xi32, #tpu.memory_space<smem>>
    %44 = arith.index_cast %43 : i32 to index
    %c0_13 = arith.constant 0 : index
    %45 = vector.load %arg4[%44, %c0_13] : memref<16x32xf32, #tpu.memory_space<vmem>>, vector<1x32xf32>
    %46 = arith.index_cast %c7_i32 : i32 to index
    %c0_14 = arith.constant 0 : index
    %47 = vector.load %arg8[%46, %c0_14] : memref<16x32xf32, #tpu.memory_space<vmem>>, vector<1x32xf32>
    tpu.vector_store %arg8[%46, %c0_14], %45 {strides = array<i32>} : memref<16x32xf32, #tpu.memory_space<vmem>>, vector<1x32xf32>,
    %c8_i32 = arith.constant 8 : i32
    %c0_15 = arith.constant 0 : index
    %c0_16 = arith.constant 0 : index
    %48 = vector.load %arg8[%c0_15, %c0_16] : memref<16x32xf32, #tpu.memory_space<vmem>>, vector<8x32xf32>
    %49 = math.tanh %48 : vector<8x32xf32>
    %c0_17 = arith.constant 0 : index
    %c0_18 = arith.constant 0 : index
    %50 = vector.load %arg8[%c0_17, %c0_18] : memref<16x32xf32, #tpu.memory_space<vmem>>, vector<8x32xf32>
    tpu.vector_store %arg8[%c0_17, %c0_18], %49 {strides = array<i32>} : memref<16x32xf32, #tpu.memory_space<vmem>>, vector<8x32xf32>,
    %c0_19 = arith.constant 0 : index
    %c0_20 = arith.constant 0 : index
    %51 = vector.load %arg5[%c0_19, %c0_20] : memref<64x32xf32, #tpu.memory_space<vmem>>, vector<32x32xf32>
    %c32 = arith.constant 32 : index
    %c0_21 = arith.constant 0 : index
    %52 = vector.load %arg5[%c32, %c0_21] : memref<64x32xf32, #tpu.memory_space<vmem>>, vector<32x32xf32>
    %c0_22 = arith.constant 0 : index
    %c0_23 = arith.constant 0 : index
    %53 = vector.load %arg6[%c0_22, %c0_23] : memref<1x32xf32, #tpu.memory_space<vmem>>, vector<1x32xf32>
    %54 = vector.shape_cast %53 : vector<1x32xf32> to vector<1x32xf32>
    %55 = vector.broadcast %54 : vector<1x32xf32> to vector<4x32xf32>
    %c0_i32_24 = arith.constant 0 : i32
    %c2_i32_25 = arith.constant 2 : i32
    %56 = arith.addi %c0_i32_24, %c2_i32_25 : i32
    %c1_i32_26 = arith.constant 1 : i32
    scf.for %arg11 = %c0_i32_24 to %56 step %c1_i32_26  : i32 {
      %c2_i32_31 = arith.constant 2 : i32
      %59 = arith.muli %arg11, %c2_i32_31 : i32
      %c0_i32_32 = arith.constant 0 : i32
      %60 = arith.addi %59, %c0_i32_32 : i32
      %61 = arith.index_cast %60 : i32 to index
      %62 = memref.load %arg2[%61] : memref<4xi32, #tpu.memory_space<smem>>
      %63 = arith.addi %59, %c0_i32_32 : i32
      %64 = arith.index_cast %63 : i32 to index
      %65 = memref.load %arg3[%64] : memref<4xi32, #tpu.memory_space<smem>>
      %c2_i32_33 = arith.constant 2 : i32
      %66 = arith.muli %62, %c2_i32_33 : i32
      %67 = arith.index_cast %66 : i32 to index
      %c0_34 = arith.constant 0 : index
      %68 = vector.load %arg8[%67, %c0_34] : memref<16x32xf32, #tpu.memory_space<vmem>>, vector<2x32xf32>
      %c2_i32_35 = arith.constant 2 : i32
      %69 = arith.muli %c0_i32_32, %c2_i32_35 : i32
      %70 = arith.index_cast %69 : i32 to index
      %c0_36 = arith.constant 0 : index
      %71 = vector.load %arg9[%70, %c0_36] : memref<4x32xf32, #tpu.memory_space<vmem>>, vector<2x32xf32>
      tpu.vector_store %arg9[%70, %c0_36], %68 {strides = array<i32>} : memref<4x32xf32, #tpu.memory_space<vmem>>, vector<2x32xf32>,
      %c2_i32_37 = arith.constant 2 : i32
      %72 = arith.muli %65, %c2_i32_37 : i32
      %73 = arith.index_cast %72 : i32 to index
      %c0_38 = arith.constant 0 : index
      %74 = vector.load %arg8[%73, %c0_38] : memref<16x32xf32, #tpu.memory_space<vmem>>, vector<2x32xf32>
      %c2_i32_39 = arith.constant 2 : i32
      %75 = arith.muli %c0_i32_32, %c2_i32_39 : i32
      %76 = arith.index_cast %75 : i32 to index
      %c0_40 = arith.constant 0 : index
      %77 = vector.load %arg10[%76, %c0_40] : memref<4x32xf32, #tpu.memory_space<vmem>>, vector<2x32xf32>
      tpu.vector_store %arg10[%76, %c0_40], %74 {strides = array<i32>} : memref<4x32xf32, #tpu.memory_space<vmem>>, vector<2x32xf32>,
      %c1_i32_41 = arith.constant 1 : i32
      %78 = arith.addi %59, %c1_i32_41 : i32
      %79 = arith.index_cast %78 : i32 to index
      %80 = memref.load %arg2[%79] : memref<4xi32, #tpu.memory_space<smem>>
      %81 = arith.addi %59, %c1_i32_41 : i32
      %82 = arith.index_cast %81 : i32 to index
      %83 = memref.load %arg3[%82] : memref<4xi32, #tpu.memory_space<smem>>
      %c2_i32_42 = arith.constant 2 : i32
      %84 = arith.muli %80, %c2_i32_42 : i32
      %85 = arith.index_cast %84 : i32 to index
      %c0_43 = arith.constant 0 : index
      %86 = vector.load %arg8[%85, %c0_43] : memref<16x32xf32, #tpu.memory_space<vmem>>, vector<2x32xf32>
      %c2_i32_44 = arith.constant 2 : i32
      %87 = arith.muli %c1_i32_41, %c2_i32_44 : i32
      %88 = arith.index_cast %87 : i32 to index
      %c0_45 = arith.constant 0 : index
      %89 = vector.load %arg9[%88, %c0_45] : memref<4x32xf32, #tpu.memory_space<vmem>>, vector<2x32xf32>
      tpu.vector_store %arg9[%88, %c0_45], %86 {strides = array<i32>} : memref<4x32xf32, #tpu.memory_space<vmem>>, vector<2x32xf32>,
      %c2_i32_46 = arith.constant 2 : i32
      %90 = arith.muli %83, %c2_i32_46 : i32
      %91 = arith.index_cast %90 : i32 to index
      %c0_47 = arith.constant 0 : index
      %92 = vector.load %arg8[%91, %c0_47] : memref<16x32xf32, #tpu.memory_space<vmem>>, vector<2x32xf32>
      %c2_i32_48 = arith.constant 2 : i32
      %93 = arith.muli %c1_i32_41, %c2_i32_48 : i32
      %94 = arith.index_cast %93 : i32 to index
      %c0_49 = arith.constant 0 : index
      %95 = vector.load %arg10[%94, %c0_49] : memref<4x32xf32, #tpu.memory_space<vmem>>, vector<2x32xf32>
      tpu.vector_store %arg10[%94, %c0_49], %92 {strides = array<i32>} : memref<4x32xf32, #tpu.memory_space<vmem>>, vector<2x32xf32>,
      %c2_i32_50 = arith.constant 2 : i32
      %c0_51 = arith.constant 0 : index
      %c0_52 = arith.constant 0 : index
      %96 = vector.load %arg9[%c0_51, %c0_52] : memref<4x32xf32, #tpu.memory_space<vmem>>, vector<4x32xf32>
      %cst = arith.constant dense<0.000000e+00> : vector<4x32xf32>
      %97 = tpu.matmul %96, %51, %cst {dimension_numbers = #tpu.dot_dimension_numbers<[1], [0], [0], [1], [0, 0, 1, 1], [], []>} : vector<4x32xf32>, vector<32x32xf32>, vector<4x32xf32> -> vector<4x32xf32>
      %c0_53 = arith.constant 0 : index
      %c0_54 = arith.constant 0 : index
      %98 = vector.load %arg10[%c0_53, %c0_54] : memref<4x32xf32, #tpu.memory_space<vmem>>, vector<4x32xf32>
      %cst_55 = arith.constant dense<0.000000e+00> : vector<4x32xf32>
      %99 = tpu.matmul %98, %52, %cst_55 {dimension_numbers = #tpu.dot_dimension_numbers<[1], [0], [0], [1], [0, 0, 1, 1], [], []>} : vector<4x32xf32>, vector<32x32xf32>, vector<4x32xf32> -> vector<4x32xf32>
      %100 = arith.addf %97, %99 : vector<4x32xf32>
      %101 = arith.addf %100, %55 : vector<4x32xf32>
      %102 = math.tanh %101 : vector<4x32xf32>
      %c2_i32_56 = arith.constant 2 : i32
      %103 = arith.muli %arg11, %c2_i32_56 : i32
      %c4_i32_57 = arith.constant 4 : i32
      %104 = arith.addi %c4_i32_57, %103 : i32
      %c2_i32_58 = arith.constant 2 : i32
      %105 = arith.muli %104, %c2_i32_58 : i32
      %106 = arith.index_cast %105 : i32 to index
      %c0_59 = arith.constant 0 : index
      %107 = vector.load %arg8[%106, %c0_59] : memref<16x32xf32, #tpu.memory_space<vmem>>, vector<4x32xf32>
      tpu.vector_store %arg8[%106, %c0_59], %102 {strides = array<i32>} : memref<16x32xf32, #tpu.memory_space<vmem>>, vector<4x32xf32>,
    }
    %c2_i32_27 = arith.constant 2 : i32
    %c12 = arith.constant 12 : index
    %c0_28 = arith.constant 0 : index
    %57 = vector.load %arg8[%c12, %c0_28] : memref<16x32xf32, #tpu.memory_space<vmem>>, vector<2x32xf32>
    %c0_29 = arith.constant 0 : index
    %c0_30 = arith.constant 0 : index
    %58 = vector.load %arg7[%c0_29, %c0_30] : memref<2x32xf32, #tpu.memory_space<vmem>>, vector<2x32xf32>
    tpu.vector_store %arg7[%c0_29, %c0_30], %57 {strides = array<i32>} : memref<2x32xf32, #tpu.memory_space<vmem>>, vector<2x32xf32>,
    return
  }
  func.func @transform_0(%arg0: i32, %arg1: memref<8xi32, #tpu.memory_space<smem>>, %arg2: memref<4xi32, #tpu.memory_space<smem>>, %arg3: memref<4xi32, #tpu.memory_space<smem>>) -> (i32, i32) {
    %c0_i32 = arith.constant 0 : i32
    %c0_i32_0 = arith.constant 0 : i32
    %c0_i32_1 = arith.constant 0 : i32
    return %c0_i32, %c0_i32_0 : i32, i32
  }
  func.func @transform_1(%arg0: i32, %arg1: memref<8xi32, #tpu.memory_space<smem>>, %arg2: memref<4xi32, #tpu.memory_space<smem>>, %arg3: memref<4xi32, #tpu.memory_space<smem>>) -> (i32, i32) {
    %c0_i32 = arith.constant 0 : i32
    %c0_i32_0 = arith.constant 0 : i32
    %c0_i32_1 = arith.constant 0 : i32
    return %c0_i32, %c0_i32_0 : i32, i32
  }
  func.func @transform_2(%arg0: i32, %arg1: memref<8xi32, #tpu.memory_space<smem>>, %arg2: memref<4xi32, #tpu.memory_space<smem>>, %arg3: memref<4xi32, #tpu.memory_space<smem>>) -> (i32, i32) {
    %c0_i32 = arith.constant 0 : i32
    %c0_i32_0 = arith.constant 0 : i32
    %c0_i32_1 = arith.constant 0 : i32
    return %c0_i32, %c0_i32_0 : i32, i32
  }
  func.func @transform_3(%arg0: i32, %arg1: memref<8xi32, #tpu.memory_space<smem>>, %arg2: memref<4xi32, #tpu.memory_space<smem>>, %arg3: memref<4xi32, #tpu.memory_space<smem>>) -> (i32, i32) {
    %c0_i32 = arith.constant 0 : i32
    %c0_i32_0 = arith.constant 0 : i32
    %c0_i32_1 = arith.constant 0 : i32
    return %c0_i32, %c0_i32_0 : i32, i32
  }
}

</mosaic_0001>

<llo_original>
// kernel: tpu_custom_call.1
$region0: #{tpu_custom_call.1}
  #allocation0 [shape = 'u32[]', space=smem, size = 0x4, offset = 0x4, fixed_abs, tag = 'smem constant byte address 0x4 - core index']
  #allocation1 [shape = 'u32[144,128]{1,0:T(1,128)}', space=vmem, size = 0x12000, scoped, tag = 'internal scratch']
  #allocation2 [shape = 'f32[16,32]{1,0:T(8,128)}', space=vmem, size = 0x2000, scoped, tag = 'scratch operand']
  #allocation3 [shape = 'f32[4,32]{1,0:T(4,128)}', space=vmem, size = 0x800, scoped, tag = 'scratch operand']
  #allocation4 [shape = 'f32[4,32]{1,0:T(4,128)}', space=vmem, size = 0x800, scoped, tag = 'scratch operand']
  #allocation5 [shape = 's32[1]{0}', space=sflag, size = 0x4, scoped, tag = 'scoped memory for tpu_custom_call.1']
  #allocation6 [shape = 'u8[512]{0}', space=smem, size = 0x200, scoped, tag = 'prefetched SMEM operand 0']
  #allocation7 [shape = 'u8[512]{0}', space=smem, size = 0x200, scoped, tag = 'prefetched SMEM operand 1']
  #allocation8 [shape = 'u8[512]{0}', space=smem, size = 0x200, scoped, tag = 'prefetched SMEM operand 2']
  %s0 = inlined_call_operand.vmem [shape: s32[8], index: 0, kind: input, shape index: {}]
  %s1 = inlined_call_operand.vmem [shape: s32[4], index: 1, kind: input, shape index: {}]
  %s2 = inlined_call_operand.vmem [shape: s32[4], index: 2, kind: input, shape index: {}]
  %s3 = inlined_call_operand.vmem [shape: f32[16,32], index: 3, kind: input, shape index: {}]
  %s4 = inlined_call_operand.vmem [shape: f32[64,32], index: 4, kind: input, shape index: {}]
  %s5 = inlined_call_operand.vmem [shape: f32[1,32], index: 5, kind: input, shape index: {}]
  %s6 = inlined_call_operand.hbm [shape: f32[2,32], index: 6, kind: output, shape index: {}]
  %s7 = sld [smem:[#allocation0]]
  $region29: #{tpu_custom_call.1} parent=0
    _
  %s9 = ssub.s32 1, %s7
  %s10 = scalar_select 0, %s9, %s7
  %s11 = sshll.u32 %s0, 4
  %s12 = int_to_ptr.vmem [resolvable:$true] %s11
  %14 = dma.vmem_to_smem %s12, 16, [#allocation6], [#allocation5]
  %s15 = sshll.u32 %s1, 4
  %s16 = int_to_ptr.vmem [resolvable:$true] %s15
  %18 = dma.vmem_to_smem %s16, 16, [#allocation7], [#allocation5]
  %s19 = sshll.u32 %s2, 4
  %s20 = int_to_ptr.vmem [resolvable:$true] %s19
  %22 = dma.vmem_to_smem %s20, 16, [#allocation8], [#allocation5]
  %23 = dma.done [#allocation5], 48
  %24 = sfence
  $region1: #{tpu_custom_call.1} parent=0
    #allocation9 [shape = 'u8[1024]{0}', space=vmem, size = 0x400, scoped, tag = 'output window, operand 0, single buffered']
    #allocation10 [shape = 's32[1]{0}', space=sflag, size = 0x4, scoped, tag = 'scoped memory for tpu_custom_call.1']
    %25 = vsyncpa [#allocation10], 0
    // Predicated region
    $region2: #{tpu_custom_call.1} parent=1 // pred_check
      _
    $region3: #{tpu_custom_call.1} parent=1 // pred_check_branch
      %27 = sbr.rel (0) target = $region5
    $region4: #{tpu_custom_call.1} parent=1 // pred_region
      _
    $region5: #{tpu_custom_call.1} parent=1 // pred_fallthru
      _
    // Predicated region
    $region6: #{tpu_custom_call.1} parent=1 // pred_check
      _
    $region7: #{tpu_custom_call.1} parent=1 // pred_check_branch
      %29 = sbr.rel (0) target = $region9
    $region8: #{tpu_custom_call.1} parent=1 // pred_region
      _
    $region9: #{tpu_custom_call.1} parent=1 // pred_fallthru
      _
    // Predicated region
    $region10: #{tpu_custom_call.1} parent=1 // pred_check
      _
    $region11: #{tpu_custom_call.1} parent=1 // pred_check_branch
      %31 = sbr.rel (0) target = $region13
    $region12: #{tpu_custom_call.1} parent=1 // pred_region
      _
    $region13: #{tpu_custom_call.1} parent=1 // pred_fallthru
      _
    %s32 = sld [smem:[#allocation6]]
    %s33 = scalar_lea.vmem %s3, %s32
    %v34 = vld [vmem:[%s33] sm:$0x1]
    %vm35 = vcmask 253952
    %36 = vst.msk [vmem:[#allocation2] sm:$0x1] %vm35, %v34
    %s37 = sld [smem:[#allocation6 + $0x1]]
    %s38 = scalar_lea.vmem %s3, %s37
    %v39 = vld [vmem:[%s38] sm:$0x1]
    %40 = vst.msk [vmem:[#allocation2 + $0x1] sm:$0x1] %vm35, %v39
    %s41 = sld [smem:[#allocation6 + $0x2]]
    %s42 = scalar_lea.vmem %s3, %s41
    %v43 = vld [vmem:[%s42] sm:$0x1]
    %44 = vst.msk [vmem:[#allocation2 + $0x2] sm:$0x1] %vm35, %v43
    %s45 = sld [smem:[#allocation6 + $0x3]]
    %s46 = scalar_lea.vmem %s3, %s45
    %v47 = vld [vmem:[%s46] sm:$0x1]
    %48 = vst.msk [vmem:[#allocation2 + $0x3] sm:$0x1] %vm35, %v47
    %s49 = sld [smem:[#allocation6 + $0x4]]
    %s50 = scalar_lea.vmem %s3, %s49
    %v51 = vld [vmem:[%s50] sm:$0x1]
    %52 = vst.msk [vmem:[#allocation2 + $0x4] sm:$0x1] %vm35, %v51
    %s53 = sld [smem:[#allocation6 + $0x5]]
    %s54 = scalar_lea.vmem %s3, %s53
    %v55 = vld [vmem:[%s54] sm:$0x1]
    %56 = vst.msk [vmem:[#allocation2 + $0x5] sm:$0x1] %vm35, %v55
    %s57 = sld [smem:[#allocation6 + $0x6]]
    %s58 = scalar_lea.vmem %s3, %s57
    %v59 = vld [vmem:[%s58] sm:$0x1]
    %60 = vst.msk [vmem:[#allocation2 + $0x6] sm:$0x1] %vm35, %v59
    %s61 = sld [smem:[#allocation6 + $0x7]]
    %s62 = scalar_lea.vmem %s3, %s61
    %v63 = vld [vmem:[%s62] sm:$0x1]
    %64 = vst.msk [vmem:[#allocation2 + $0x7] sm:$0x1] %vm35, %v63
    %v65 = vld [vmem:[#allocation2] sm:$0xff]
    %v66 = vtanh.pop %v65
    %vm67 = vcmask 261120
    %68 = vst.msk [vmem:[#allocation2] sm:$0xff] %vm67, %v66
    %v69 = vld [vmem:[%s4] sm:$0xff]
    %v70 = vld [vmem:[%s4 + $0x8] sm:$0xff]
    %v71 = vld [vmem:[%s4 + $0x10] sm:$0xff]
    %v72 = vld [vmem:[%s4 + $0x18] sm:$0xff]
    %v73 = vld [vmem:[%s4 + $0x20] sm:$0xff]
    %v74 = vld [vmem:[%s4 + $0x28] sm:$0xff]
    %v75 = vld [vmem:[%s4 + $0x30] sm:$0xff]
    %v76 = vld [vmem:[%s4 + $0x38] sm:$0xff]
    %v77 = vld [vmem:[%s5] sm:$0x1]
    %v79 = vlaneseq
    %v80 = vshrl.u32 %v79, 7
    %v81 = vsub.s32 0, %v80
    %v82 = vrot.slane %v77, %v81
    loop: start=0, step=1, limit=2
    $region14: #{tpu_custom_call.1} parent=1 // loop_pre_header
      _
    $region15: #{tpu_custom_call.1} parent=1 // loop_header
      %s85 = sphi 0, %s89
      %p86 = scmp.ge.s32.totalorder %s85, 2
    $region16: #{tpu_custom_call.1} parent=1 // loop_header_branch
      %88 = sbr.rel (%p86) target = $region20
    $region17: #{tpu_custom_call.1} parent=1 // loop_body
      %s90 = smul.u32 %s85, 2
      %s91 = sld [smem:[#allocation7 + %s90]]
      %s92 = sld [smem:[#allocation8 + %s90]]
      %s93 = smul.u32 %s91, 2
      %s94 = scalar_lea.vmem [#allocation2], %s93
      %v95 = vld [vmem:[%s94] sm:$0x3]
      %vm96 = vcmask 254976
      %97 = vst.msk [vmem:[#allocation3] sm:$0x3] %vm96, %v95
      %s98 = smul.u32 %s92, 2
      %s99 = scalar_lea.vmem [#allocation2], %s98
      %v100 = vld [vmem:[%s99] sm:$0x3]
      %101 = vst.msk [vmem:[#allocation4] sm:$0x3] %vm96, %v100
      %s102 = sadd.s32 %s90, 1
      %s103 = sld [smem:[#allocation7 + %s102]]
      %s104 = sld [smem:[#allocation8 + %s102]]
      %s105 = smul.u32 %s103, 2
      %s106 = scalar_lea.vmem [#allocation2], %s105
      %v107 = vld [vmem:[%s106] sm:$0x3]
      %108 = vst.msk [vmem:[#allocation3 + $0x2] sm:$0x3] %vm96, %v107
      %s109 = smul.u32 %s104, 2
      %s110 = scalar_lea.vmem [#allocation2], %s109
      %v111 = vld [vmem:[%s110] sm:$0x3]
      %112 = vst.msk [vmem:[#allocation4 + $0x2] sm:$0x3] %vm96, %v111
      %v113 = vld [vmem:[#allocation3] sm:$0xf]
      %v114 = vld [vmem:[#allocation4] sm:$0xf]
      %v116 = vsel %vm67, %v114, 0
      %118 = vmatprep.subr.mxu0 0.0
      %119 = vmatpush1.msra.mxu0 %v73
      %120 = vmatprep.subr.mxu0 0.0
      %121 = vmatpush1.msra.mxu0 %v74
      %122 = vmatprep.subr.mxu0 0.0
      %123 = vmatpush1.msra.mxu0 %v75
      %124 = vmatprep.subr.mxu0 0.0
      %125 = vmatpush1.msra.mxu0 %v76
      %126 = vmatprep.subr.mxu0 0.0
      %127 = vmatpush1.msra.mxu0 0.0
      %128 = vmatprep.subr.mxu0 0.0
      %129 = vmatpush1.msra.mxu0 0.0
      %130 = vmatprep.subr.mxu0 0.0
      %131 = vmatpush1.msra.mxu0 0.0
      %132 = vmatprep.subr.mxu0 0.0
      %133 = vmatpush1.msra.mxu0 0.0
      %134 = vmatprep.subr.mxu0 0.0
      %135 = vmatpush1.msra.mxu0 0.0
      %136 = vmatprep.subr.mxu0 0.0
      %137 = vmatpush1.msra.mxu0 0.0
      %138 = vmatprep.subr.mxu0 0.0
      %139 = vmatpush1.msra.mxu0 0.0
      %140 = vmatprep.subr.mxu0 0.0
      %141 = vmatpush1.msra.mxu0 0.0
      %142 = vmatprep.subr.mxu0 0.0
      %143 = vmatpush1.msra.mxu0 0.0
      %144 = vmatprep.subr.mxu0 0.0
      %145 = vmatpush1.msra.mxu0 0.0
      %146 = vmatprep.subr.mxu0 0.0
      %147 = vmatpush1.msra.mxu0 0.0
      %148 = vmatprep.subr.mxu0 0.0
      %149 = vmatpush1.msra.mxu0 0.0
      %150 = vmatprep.subr.mxu0 0.0
      %151 = vmatpush1.msra.mxu0 0.0
      %152 = vmatprep.subr.mxu0 0.0
      %153 = vmatpush1.msra.mxu0 0.0
      %154 = vmatprep.subr.mxu0 0.0
      %155 = vmatpush1.msra.mxu0 0.0
      %156 = vmatprep.subr.mxu0 0.0
      %157 = vmatpush1.msra.mxu0 0.0
      %158 = vmatprep.subr.mxu0 0.0
      %159 = vmatpush1.msra.mxu0 0.0
      %160 = vmatprep.subr.mxu0 0.0
      %161 = vmatpush1.msra.mxu0 0.0
      %162 = vmatprep.subr.mxu0 0.0
      %163 = vmatpush1.msra.mxu0 0.0
      %164 = vmatprep.subr.mxu0 0.0
      %165 = vmatpush1.msra.mxu0 0.0
      %166 = vmatprep.subr.mxu0 0.0
      %167 = vmatpush1.msra.mxu0 0.0
      %168 = vmatprep.subr.mxu0 0.0
      %169 = vmatpush1.msra.mxu0 0.0
      %170 = vmatprep.subr.mxu0 0.0
      %171 = vmatpush1.msra.mxu0 0.0
      %172 = vmatprep.subr.mxu0 0.0
      %173 = vmatpush1.msra.mxu0 0.0
      %174 = vmatprep.subr.mxu0 0.0
      %175 = vmatpush1.msra.mxu0 0.0
      %176 = vmatprep.subr.mxu0 0.0
      %177 = vmatpush1.msra.mxu0 0.0
      %178 = vmatprep.subr.mxu0 0.0
      %179 = vmatpush1.msra.mxu0 0.0
      %180 = vmatprep.subr.mxu0 0.0
      %181 = vmatpush1.msra.mxu0 0.0
      %182 = vmatprep.mubr.f32.mxu0 0.0
      %183 = vmatmul.mubr.f32.gmra.mrb[0].mxu0 %v116
      %v184 = vpop.f32.mrb[0].mxu0
      %v185 = vadd.f32 0.0, %v184
      %v186 = vpop.f32.mrb[0].mxu0
      %187 = vdwg.mxu0
      %v189 = vsel %vm67, %v113, 0
      %191 = vmatprep.subr.mxu0 0.0
      %192 = vmatpush1.msra.mxu0 %v69
      %193 = vmatprep.subr.mxu0 0.0
      %194 = vmatpush1.msra.mxu0 %v70
      %195 = vmatprep.subr.mxu0 0.0
      %196 = vmatpush1.msra.mxu0 %v71
      %197 = vmatprep.subr.mxu0 0.0
      %198 = vmatpush1.msra.mxu0 %v72
      %199 = vmatprep.subr.mxu0 0.0
      %200 = vmatpush1.msra.mxu0 0.0
      %201 = vmatprep.subr.mxu0 0.0
      %202 = vmatpush1.msra.mxu0 0.0
      %203 = vmatprep.subr.mxu0 0.0
      %204 = vmatpush1.msra.mxu0 0.0
      %205 = vmatprep.subr.mxu0 0.0
      %206 = vmatpush1.msra.mxu0 0.0
      %207 = vmatprep.subr.mxu0 0.0
      %208 = vmatpush1.msra.mxu0 0.0
      %209 = vmatprep.subr.mxu0 0.0
      %210 = vmatpush1.msra.mxu0 0.0
      %211 = vmatprep.subr.mxu0 0.0
      %212 = vmatpush1.msra.mxu0 0.0
      %213 = vmatprep.subr.mxu0 0.0
      %214 = vmatpush1.msra.mxu0 0.0
      %215 = vmatprep.subr.mxu0 0.0
      %216 = vmatpush1.msra.mxu0 0.0
      %217 = vmatprep.subr.mxu0 0.0
      %218 = vmatpush1.msra.mxu0 0.0
      %219 = vmatprep.subr.mxu0 0.0
      %220 = vmatpush1.msra.mxu0 0.0
      %221 = vmatprep.subr.mxu0 0.0
      %222 = vmatpush1.msra.mxu0 0.0
      %223 = vmatprep.subr.mxu0 0.0
      %224 = vmatpush1.msra.mxu0 0.0
      %225 = vmatprep.subr.mxu0 0.0
      %226 = vmatpush1.msra.mxu0 0.0
      %227 = vmatprep.subr.mxu0 0.0
      %228 = vmatpush1.msra.mxu0 0.0
      %229 = vmatprep.subr.mxu0 0.0
      %230 = vmatpush1.msra.mxu0 0.0
      %231 = vmatprep.subr.mxu0 0.0
      %232 = vmatpush1.msra.mxu0 0.0
      %233 = vmatprep.subr.mxu0 0.0
      %234 = vmatpush1.msra.mxu0 0.0
      %235 = vmatprep.subr.mxu0 0.0
      %236 = vmatpush1.msra.mxu0 0.0
      %237 = vmatprep.subr.mxu0 0.0
      %238 = vmatpush1.msra.mxu0 0.0
      %239 = vmatprep.subr.mxu0 0.0
      %240 = vmatpush1.msra.mxu0 0.0
      %241 = vmatprep.subr.mxu0 0.0
      %242 = vmatpush1.msra.mxu0 0.0
      %243 = vmatprep.subr.mxu0 0.0
      %244 = vmatpush1.msra.mxu0 0.0
      %245 = vmatprep.subr.mxu0 0.0
      %246 = vmatpush1.msra.mxu0 0.0
      %247 = vmatprep.subr.mxu0 0.0
      %248 = vmatpush1.msra.mxu0 0.0
      %249 = vmatprep.subr.mxu0 0.0
      %250 = vmatpush1.msra.mxu0 0.0
      %251 = vmatprep.subr.mxu0 0.0
      %252 = vmatpush1.msra.mxu0 0.0
      %253 = vmatprep.subr.mxu0 0.0
      %254 = vmatpush1.msra.mxu0 0.0
      %255 = vmatprep.mubr.f32.mxu0 0.0
      %256 = vmatmul.mubr.f32.gmra.mrb[0].mxu0 %v189
      %v257 = vpop.f32.mrb[0].mxu0
      %v258 = vadd.f32 %v185, %v257
      %v259 = vpop.f32.mrb[0].mxu0
      %260 = vdwg.mxu0
      %v261 = vadd.f32 %v258, %v82
      %v262 = vtanh.pop %v261
      %s263 = sadd.s32 %s90, 4
      %s264 = smul.u32 %s263, 2
      %s265 = scalar_lea.vmem [#allocation2], %s264
      %vm266 = vcmask 257024
      %267 = vst.msk [vmem:[%s265] sm:$0xf] %vm266, %v262
    $region18: #{tpu_custom_call.1} parent=1 // loop_footer
      %s89 = sadd.s32 1, %s85
    $region19: #{tpu_custom_call.1} parent=1 // loop_footer_branch
      %84 = sbr.rel target = $region15
    $region20: #{tpu_custom_call.1} parent=1 // loop_exit
      _
    %v268 = vld [vmem:[#allocation2 + $0xc] sm:$0x3]
    %vm269 = vcmask 254976
    %270 = vst.msk [vmem:[#allocation9] sm:$0x3] %vm269, %v268
    // Predicated region
    $region21: #{tpu_custom_call.1} parent=1 // pred_check
      _
    $region22: #{tpu_custom_call.1} parent=1 // pred_check_branch
      %272 = sbr.rel (0) target = $region24
    $region23: #{tpu_custom_call.1} parent=1 // pred_region
      %s274 = ssub.s32 32, 32
      %275 = vsyncadd [#allocation10], %s274
      %s277 = sshll.u32 [#allocation9], 4
      %s278 = int_to_ptr.vmem [resolvable:$true] %s277
      %280 = dma.vmem_to_hbm [thread:$0]  %s278, 32, %s6, [#allocation10]
    $region24: #{tpu_custom_call.1} parent=1 // pred_fallthru
      _
    // Predicated region
    $region25: #{tpu_custom_call.1} parent=1 // pred_check
      _
    $region26: #{tpu_custom_call.1} parent=1 // pred_check_branch
      %282 = sbr.rel (0) target = $region28
    $region27: #{tpu_custom_call.1} parent=1 // pred_region
      %283 = dma.done [#allocation10], 32
    $region28: #{tpu_custom_call.1} parent=1 // pred_fallthru
      _
    %284 = vsyncpa [#allocation10], 1

</llo_original>
